<compile_context>
chip_gen: v7x
topology: tpu7x:2x2x1
jax: 0.10.0
libtpu: 0.0.40
codegen_flags: <defaults>
</compile_context>

<pallas_src>
import functools

import jax
import jax.numpy as jnp
from jax.experimental import pallas as pl
from jax.experimental.pallas import tpu as pltpu


def _kl_loss_kernel(pred_ref, label_ref, out_ref, acc_ref, *, batch, tb, steps):
    s = pl.program_id(0)          # parallel axis (splits)
    i = pl.program_id(1)          # reduction axis (batch tiles within split)

    @pl.when(i == 0)
    def _init():
        acc_ref[...] = jnp.zeros_like(acc_ref)

    pred = pred_ref[...].astype(jnp.float32)
    lab = label_ref[...].astype(jnp.float32) * 10.0      # temperature * 10

    # log_softmax(prediction, axis=1): only the per-row lse is needed.
    p_max = jnp.max(pred, axis=1, keepdims=True)
    p_shift = pred - p_max
    lse_p = jnp.log(jnp.sum(jnp.exp(p_shift), axis=1, keepdims=True))

    # softmax(label*10, axis=1) in log space; q is never materialized.
    l_max = jnp.max(lab, axis=1, keepdims=True)
    l_shift = lab - l_max
    l_exp = jnp.exp(l_shift)
    l_sum = jnp.sum(l_exp, axis=1, keepdims=True)
    lse_l = jnp.log(l_sum)

    # Row KL: sum_j q_j*(log q_j - log p_j)
    #       = (1/l_sum) * sum_j l_exp_j*(l_shift_j - p_shift_j) + (lse_p - lse_l)
    inner = jnp.sum(l_exp * (l_shift - p_shift), axis=1, keepdims=True)
    row_kl = inner / l_sum + (lse_p - lse_l)

    # Mask rows of the ragged last tile / clamped out-of-range tiles.
    # (jnp.where is a select, so unspecified/NaN rows cannot leak into the sum.)
    start = (s * steps + i) * tb
    rows_valid = batch - start                       # may be <= 0 (fully OOB)
    row_ids = jax.lax.broadcasted_iota(jnp.int32, (tb, 1), 0)
    row_kl = jnp.where(row_ids < rows_valid, row_kl, 0.0)

    # Pure VPU add; reduction to scalar deferred to the finalize.
    acc_ref[...] += row_kl

    @pl.when(i == steps - 1)
    def _finalize():
        c = pred_ref.shape[1]
        val = jnp.sum(acc_ref[...]) / c              # total/(B*C) * B == total/C
        out_ref[...] = jnp.full(out_ref.shape, val, dtype=jnp.float32)


def _round_up(x, m):
    return ((x + m - 1) // m) * m


def kl_loss(prediction, label, *, block_rows=None, num_splits=2):
    """prediction, label: (B, C) arrays. Returns scalar float32 loss."""
    assert prediction.shape == label.shape and prediction.ndim == 2
    B, C = prediction.shape

    if block_rows is None:
        # ~1M f32 elements (~4 MiB) per input tile; capped at 8192 rows so the
        # lane-padded footprint for small C and the (tb,1) accumulator stay
        # bounded; never larger than the (sublane-rounded) batch itself.
        tb = (((1024 * 1024) // max(C, 1)) // 8) * 8
        tb = max(8, min(tb, 8192, _round_up(B, 8)))
    else:
        tb = max(8, _round_up(block_rows, 8))

    n_blocks = pl.cdiv(B, tb)
    splits = num_splits if n_blocks >= num_splits else 1
    steps = pl.cdiv(n_blocks, splits)
    last_block = n_blocks - 1

    # Clamp so no tile index is fully out of range (the clamped duplicate tile
    # is fully masked inside the kernel via rows_valid <= 0).
    def in_map(s, i):
        return (jnp.minimum(s * steps + i, last_block), 0)

    kernel = functools.partial(_kl_loss_kernel, batch=B, tb=tb, steps=steps)

    out = pl.pallas_call(
        kernel,
        out_shape=jax.ShapeDtypeStruct((splits * 8, 128), jnp.float32),
        grid_spec=pltpu.PrefetchScalarGridSpec(
            num_scalar_prefetch=0,
            grid=(splits, steps),
            in_specs=[
                pl.BlockSpec((tb, C), in_map),
                pl.BlockSpec((tb, C), in_map),
            ],
            out_specs=pl.BlockSpec((8, 128), lambda s, i: (s, 0)),
            scratch_shapes=[pltpu.VMEM((tb, 1), jnp.float32)],
        ),
        compiler_params=pltpu.CompilerParams(
            dimension_semantics=("parallel", "arbitrary"),
            vmem_limit_bytes=48 * 1024 * 1024,
        ),
    )(prediction, label)

    # One scalar per split (broadcast across its (8,128) block); sum them.
    partials = out.reshape(splits, 8, 128)[:, 0, 0]
    return jnp.sum(partials)


def kl_loss_ref(prediction, label):
    """Pure-JAX reference for sanity checking."""
    log_p = jax.nn.log_softmax(prediction.astype(jnp.float32), axis=1)
    q = jax.nn.softmax(label.astype(jnp.float32) * 10.0, axis=1)
    kl = jnp.where(q > 0.0, q * jnp.log(jnp.where(q > 0.0, q, 1.0)), 0.0) - q * log_p
    b = prediction.shape[0]
    return jnp.mean(kl) * b


if __name__ == "__main__":
    key = jax.random.PRNGKey(0)
    k1, k2, k3, k4 = jax.random.split(key, 4)

    # Small main test (B not a multiple of 8 -> exercises ragged-tile masking).
    B, C = 6, 16
    prediction = jax.random.normal(k1, (B, C), dtype=jnp.float32)
    label = jax.random.normal(k2, (B, C), dtype=jnp.float32)

    loss = kl_loss(prediction, label)
    jax.block_until_ready(loss)
    ref = kl_loss_ref(prediction, label)
    assert jnp.allclose(loss, ref, rtol=1e-4, atol=1e-5), (loss, ref)

    # Second test forces a multi-block, multi-split grid with a ragged last
    # tile AND a fully out-of-range (clamped + masked) tile on split 1.
    B2, C2 = 20, 128
    prediction2 = jax.random.normal(k3, (B2, C2), dtype=jnp.float32)
    label2 = jax.random.normal(k4, (B2, C2), dtype=jnp.float32)

    loss2 = kl_loss(prediction2, label2, block_rows=8)
    jax.block_until_ready(loss2)
    ref2 = kl_loss_ref(prediction2, label2)
    assert jnp.allclose(loss2, ref2, rtol=1e-4, atol=1e-5), (loss2, ref2)

    print("KERNEL_OK")
</pallas_src>

<mosaic_0001>
module attributes {stable_mosaic.version = 11 : i64} {
  func.func @_kl_loss_kernel(%arg0: i32, %arg1: i32, %arg2: memref<8x16xf32, #tpu.memory_space<vmem>>, %arg3: memref<8x16xf32, #tpu.memory_space<vmem>>, %arg4: memref<8x128xf32, #tpu.memory_space<vmem>>, %arg5: memref<8x1xf32, #tpu.memory_space<vmem>>) attributes {dimension_semantics = [#tpu.dimension_semantics<parallel>, #tpu.dimension_semantics<arbitrary>], iteration_bounds = array<i64: 1, 1>, scalar_prefetch = 0 : i64, scratch_operands = 1 : i64, tpu.core_type = #tpu.core_type<tc>, window_params = [{transform_indices = @transform_0, window_bounds = array<i64: 8, 16>}, {transform_indices = @transform_1, window_bounds = array<i64: 8, 16>}, {transform_indices = @transform_2, window_bounds = array<i64: 8, 128>}]} {
    %c0_i32 = arith.constant 0 : i32
    %0 = arith.cmpi eq, %arg1, %c0_i32 : i32
    %1 = arith.extui %0 : i1 to i32
    %c0_i32_0 = arith.constant 0 : i32
    %2 = arith.cmpi ne, %1, %c0_i32_0 : i32
    scf.if %2 {
      %cst_16 = arith.constant 0.000000e+00 : f32
      %45 = vector.broadcast %cst_16 : f32 to vector<8x1xf32>
      %c0_17 = arith.constant 0 : index
      %c0_18 = arith.constant 0 : index
      %46 = vector.load %arg5[%c0_17, %c0_18] : memref<8x1xf32, #tpu.memory_space<vmem>>, vector<8x1xf32>
      tpu.vector_store %arg5[%c0_17, %c0_18], %45 {strides = array<i32>} : memref<8x1xf32, #tpu.memory_space<vmem>>, vector<8x1xf32>,
    } else {
    }
    %c0 = arith.constant 0 : index
    %c0_1 = arith.constant 0 : index
    %3 = vector.load %arg2[%c0, %c0_1] : memref<8x16xf32, #tpu.memory_space<vmem>>, vector<8x16xf32>
    %c0_2 = arith.constant 0 : index
    %c0_3 = arith.constant 0 : index
    %4 = vector.load %arg3[%c0_2, %c0_3] : memref<8x16xf32, #tpu.memory_space<vmem>>, vector<8x16xf32>
    %cst = arith.constant 1.000000e+01 : f32
    %5 = vector.broadcast %cst : f32 to vector<8x16xf32>
    %6 = arith.mulf %4, %5 : vector<8x16xf32>
    %cst_4 = arith.constant dense<0xFF800000> : vector<8xf32>
    %7 = vector.multi_reduction <maximumf>, %3, %cst_4 [1] : vector<8x16xf32> to vector<8xf32>
    %8 = vector.shape_cast %7 : vector<8xf32> to vector<8x1xf32>
    %9 = vector.broadcast %8 : vector<8x1xf32> to vector<8x16xf32>
    %10 = arith.subf %3, %9 : vector<8x16xf32>
    %11 = math.exp %10 : vector<8x16xf32>
    %cst_5 = arith.constant dense<0.000000e+00> : vector<8xf32>
    %12 = vector.multi_reduction <add>, %11, %cst_5 [1] : vector<8x16xf32> to vector<8xf32>
    %13 = vector.shape_cast %12 : vector<8xf32> to vector<8x1xf32>
    %14 = math.log %13 : vector<8x1xf32>
    %cst_6 = arith.constant dense<0xFF800000> : vector<8xf32>
    %15 = vector.multi_reduction <maximumf>, %6, %cst_6 [1] : vector<8x16xf32> to vector<8xf32>
    %16 = vector.shape_cast %15 : vector<8xf32> to vector<8x1xf32>
    %17 = vector.broadcast %16 : vector<8x1xf32> to vector<8x16xf32>
    %18 = arith.subf %6, %17 : vector<8x16xf32>
    %19 = math.exp %18 : vector<8x16xf32>
    %cst_7 = arith.constant dense<0.000000e+00> : vector<8xf32>
    %20 = vector.multi_reduction <add>, %19, %cst_7 [1] : vector<8x16xf32> to vector<8xf32>
    %21 = vector.shape_cast %20 : vector<8xf32> to vector<8x1xf32>
    %22 = math.log %21 : vector<8x1xf32>
    %23 = arith.subf %18, %10 : vector<8x16xf32>
    %24 = arith.mulf %19, %23 : vector<8x16xf32>
    %cst_8 = arith.constant dense<0.000000e+00> : vector<8xf32>
    %25 = vector.multi_reduction <add>, %24, %cst_8 [1] : vector<8x16xf32> to vector<8xf32>
    %26 = vector.shape_cast %25 : vector<8xf32> to vector<8x1xf32>
    %27 = arith.divf %26, %21 : vector<8x1xf32>
    %28 = arith.subf %14, %22 : vector<8x1xf32>
    %29 = arith.addf %27, %28 : vector<8x1xf32>
    %c1_i32 = arith.constant 1 : i32
    %30 = arith.muli %arg0, %c1_i32 : i32
    %31 = arith.addi %30, %arg1 : i32
    %c8_i32 = arith.constant 8 : i32
    %32 = arith.muli %31, %c8_i32 : i32
    %c6_i32 = arith.constant 6 : i32
    %33 = arith.subi %c6_i32, %32 : i32
    %34 = tpu.iota {dimensions = array<i32: 0>} : vector<8x1xi32>
    %35 = vector.broadcast %33 : i32 to vector<8x1xi32>
    %36 = arith.cmpi slt, %34, %35 : vector<8x1xi32>
    %cst_9 = arith.constant 0.000000e+00 : f32
    %37 = vector.broadcast %cst_9 : f32 to vector<8x1xf32>
    %38 = arith.select %36, %29, %37 : vector<8x1xi1>, vector<8x1xf32>
    %c0_10 = arith.constant 0 : index
    %c0_11 = arith.constant 0 : index
    %39 = vector.load %arg5[%c0_10, %c0_11] : memref<8x1xf32, #tpu.memory_space<vmem>>, vector<8x1xf32>
    %40 = arith.addf %39, %38 : vector<8x1xf32>
    %c0_12 = arith.constant 0 : index
    %c0_13 = arith.constant 0 : index
    %41 = vector.load %arg5[%c0_12, %c0_13] : memref<8x1xf32, #tpu.memory_space<vmem>>, vector<8x1xf32>
    tpu.vector_store %arg5[%c0_12, %c0_13], %40 {strides = array<i32>} : memref<8x1xf32, #tpu.memory_space<vmem>>, vector<8x1xf32>,
    %c0_i32_14 = arith.constant 0 : i32
    %42 = arith.cmpi eq, %arg1, %c0_i32_14 : i32
    %43 = arith.extui %42 : i1 to i32
    %c0_i32_15 = arith.constant 0 : i32
    %44 = arith.cmpi ne, %43, %c0_i32_15 : i32
    scf.if %44 {
      %c0_16 = arith.constant 0 : index
      %c0_17 = arith.constant 0 : index
      %45 = vector.load %arg5[%c0_16, %c0_17] : memref<8x1xf32, #tpu.memory_space<vmem>>, vector<8x1xf32>
      %46 = vector.shape_cast %45 : vector<8x1xf32> to vector<1x8x1xf32>
      %cst_18 = arith.constant dense<0.000000e+00> : vector<1xf32>
      %47 = vector.multi_reduction <add>, %46, %cst_18 [1, 2] : vector<1x8x1xf32> to vector<1xf32>
      %48 = vector.shape_cast %47 : vector<1xf32> to vector<1x1x1xf32>
      %49 = vector.extract %48[0, 0, 0] : f32 from vector<1x1x1xf32>
      %cst_19 = arith.constant 1.600000e+01 : f32
      %50 = arith.divf %49, %cst_19 : f32
      %51 = vector.broadcast %50 : f32 to vector<8x128xf32>
      %c0_20 = arith.constant 0 : index
      %c0_21 = arith.constant 0 : index
      %52 = vector.load %arg4[%c0_20, %c0_21] : memref<8x128xf32, #tpu.memory_space<vmem>>, vector<8x128xf32>
      tpu.vector_store %arg4[%c0_20, %c0_21], %51 {strides = array<i32>} : memref<8x128xf32, #tpu.memory_space<vmem>>, vector<8x128xf32>,
    } else {
    }
    return
  }
  func.func @transform_0(%arg0: i32, %arg1: i32) -> (i32, i32) {
    %c1_i32 = arith.constant 1 : i32
    %0 = arith.muli %arg0, %c1_i32 : i32
    %1 = arith.addi %0, %arg1 : i32
    %c0_i32 = arith.constant 0 : i32
    %2 = arith.minsi %1, %c0_i32 : i32
    %c0_i32_0 = arith.constant 0 : i32
    %c0_i32_1 = arith.constant 0 : i32
    return %2, %c0_i32_0 : i32, i32
  }
  func.func @transform_1(%arg0: i32, %arg1: i32) -> (i32, i32) {
    %c1_i32 = arith.constant 1 : i32
    %0 = arith.muli %arg0, %c1_i32 : i32
    %1 = arith.addi %0, %arg1 : i32
    %c0_i32 = arith.constant 0 : i32
    %2 = arith.minsi %1, %c0_i32 : i32
    %c0_i32_0 = arith.constant 0 : i32
    %c0_i32_1 = arith.constant 0 : i32
    return %2, %c0_i32_0 : i32, i32
  }
  func.func @transform_2(%arg0: i32, %arg1: i32) -> (i32, i32) {
    %c0_i32 = arith.constant 0 : i32
    %c0_i32_0 = arith.constant 0 : i32
    return %arg0, %c0_i32 : i32, i32
  }
}

</mosaic_0001>

<llo_original>
// kernel: tpu_custom_call.1
$region0: #{tpu_custom_call.1}
  #allocation0 [shape = 'u32[]', space=smem, size = 0x4, offset = 0x4, fixed_abs, tag = 'smem constant byte address 0x4 - core index']
  #allocation1 [shape = 'u32[144,128]{1,0:T(1,128)}', space=vmem, size = 0x12000, scoped, tag = 'internal scratch']
  #allocation2 [shape = 'f32[8,1]{1,0:T(8,128)}', space=vmem, size = 0x1000, scoped, tag = 'scratch operand']
  %s0 = inlined_call_operand.hbm [shape: f32[6,16], index: 0, kind: input, shape index: {}]
  %s1 = inlined_call_operand.hbm [shape: f32[6,16], index: 1, kind: input, shape index: {}]
  %s2 = inlined_call_operand.hbm [shape: f32[8,128], index: 2, kind: output, shape index: {}]
  %s3 = sld [smem:[#allocation0]]
  $region34: #{tpu_custom_call.1} parent=0
    _
  %s5 = ssub.s32 1, %s3
  %s6 = scalar_select 0, %s5, %s3
  $region1: #{tpu_custom_call.1} parent=0
    #allocation3 [shape = 'u8[4096]{0}', space=vmem, size = 0x1000, scoped, tag = 'input window, operand 0, single buffered']
    #allocation4 [shape = 's32[1]{0}', space=sflag, size = 0x4, scoped, tag = 'scoped memory for tpu_custom_call.1']
    #allocation5 [shape = 's32[1]{0}', space=sflag, size = 0x4, scoped, tag = 'scoped memory for tpu_custom_call.1']
    #allocation6 [shape = 'u8[4096]{0}', space=vmem, size = 0x1000, scoped, tag = 'input window, operand 1, single buffered']
    #allocation7 [shape = 's32[1]{0}', space=sflag, size = 0x4, scoped, tag = 'scoped memory for tpu_custom_call.1']
    #allocation8 [shape = 'u8[4096]{0}', space=vmem, size = 0x1000, scoped, tag = 'output window, operand 0, single buffered']
    %7 = vsyncpa [#allocation4], 0
    %8 = vsyncpa [#allocation7], 0
    %9 = vsyncpa [#allocation5], 0
    // Predicated region
    $region2: #{tpu_custom_call.1} parent=1 // pred_check
      _
    $region3: #{tpu_custom_call.1} parent=1 // pred_check_branch
      %11 = sbr.rel (0) target = $region5
    $region4: #{tpu_custom_call.1} parent=1 // pred_region
      %s12 = sadd.s32 0, 0
      %p13 = scmp.lt.s32.totalorder %s12, 0
      %s14 = scalar_select %p13, %s12, 0
      %s16 = ssub.s32 128, 128
      %17 = vsyncadd [#allocation4], %s16
      %s18 = smul.addr %s14, 128
      %s19 = scalar_lea.hbm %s0, %s18
      %s21 = sshll.u32 [#allocation3], 4
      %s22 = int_to_ptr.vmem [resolvable:$true] %s21
      %24 = dma.hbm_to_vmem [thread:$0]  %s19, 128, %s22, [#allocation4]
    $region5: #{tpu_custom_call.1} parent=1 // pred_fallthru
      _
    // Predicated region
    $region6: #{tpu_custom_call.1} parent=1 // pred_check
      _
    $region7: #{tpu_custom_call.1} parent=1 // pred_check_branch
      %26 = sbr.rel (0) target = $region9
    $region8: #{tpu_custom_call.1} parent=1 // pred_region
      %s27 = sadd.s32 0, 0
      %p28 = scmp.lt.s32.totalorder %s27, 0
      %s29 = scalar_select %p28, %s27, 0
      %s31 = ssub.s32 128, 128
      %32 = vsyncadd [#allocation7], %s31
      %s33 = smul.addr %s29, 128
      %s34 = scalar_lea.hbm %s1, %s33
      %s36 = sshll.u32 [#allocation6], 4
      %s37 = int_to_ptr.vmem [resolvable:$true] %s36
      %39 = dma.hbm_to_vmem [thread:$0]  %s34, 128, %s37, [#allocation7]
    $region9: #{tpu_custom_call.1} parent=1 // pred_fallthru
      _
    // Predicated region
    $region10: #{tpu_custom_call.1} parent=1 // pred_check
      _
    $region11: #{tpu_custom_call.1} parent=1 // pred_check_branch
      %41 = sbr.rel (0) target = $region13
    $region12: #{tpu_custom_call.1} parent=1 // pred_region
      %42 = dma.done [#allocation4], 128
    $region13: #{tpu_custom_call.1} parent=1 // pred_fallthru
      _
    // Predicated region
    $region14: #{tpu_custom_call.1} parent=1 // pred_check
      _
    $region15: #{tpu_custom_call.1} parent=1 // pred_check_branch
      %44 = sbr.rel (0) target = $region17
    $region16: #{tpu_custom_call.1} parent=1 // pred_region
      %45 = dma.done [#allocation7], 128
    $region17: #{tpu_custom_call.1} parent=1 // pred_fallthru
      _
    %s46 = sadd.s32 0, 0
    %p47 = scmp.lt.s32.totalorder %s46, 0
    %s48 = scalar_select %p47, %s46, 0
    %s49 = sadd.s32 0, 0
    %p50 = scmp.lt.s32.totalorder %s49, 0
    %s51 = scalar_select %p50, %s49, 0
    %p52 = scmp.eq.s32.totalorder 0, 0
    // Predicated region
    $region18: #{tpu_custom_call.1} parent=1 // pred_check
      %p53 = pneg %p52
    $region19: #{tpu_custom_call.1} parent=1 // pred_check_branch
      %55 = sbr.rel (%p53) target = $region21
    $region20: #{tpu_custom_call.1} parent=1 // pred_region
      %vm56 = vcmask 7168
      %57 = vst.msk [vmem:[#allocation2] sm:$0xff] %vm56, 0.0
    $region21: #{tpu_custom_call.1} parent=1 // pred_fallthru
      _
    %v58 = vld [vmem:[#allocation3] sm:$0xff]
    %v59 = vld [vmem:[#allocation6] sm:$0xff]
    %v60 = vmul.f32 %v59, 10.0
    %vm61 = vcmask 130048
    %v62 = vsel %vm61, %v58, -inf
    %63 = vmax.xlane.f32.xlu0 %v62
    %v64 = vpop.xlane.xlu0 %63
    %v65 = vsub.f32 %v58, %v64
    %v66 = vmul.f32 %v65, 1.442695
    %v67 = vpow.pop %v66
    %v68 = vsel %vm61, %v67, 0.0
    %69 = vadd.xlane.f32.xlu0 %v68
    %v70 = vpop.xlane.xlu0 %69
    %v71 = vlog2.pop %v70
    %v72 = vmul.f32 %v71, 0.6931472
    %v73 = vsel %vm61, %v60, -inf
    %74 = vmax.xlane.f32.xlu0 %v73
    %v75 = vpop.xlane.xlu0 %74
    %v76 = vsub.f32 %v60, %v75
    %v77 = vmul.f32 %v76, 1.442695
    %v78 = vpow.pop %v77
    %v79 = vsel %vm61, %v78, 0.0
    %80 = vadd.xlane.f32.xlu0 %v79
    %v81 = vpop.xlane.xlu0 %80
    %v82 = vlog2.pop %v81
    %v83 = vmul.f32 %v82, 0.6931472
    %v84 = vsub.f32 %v76, %v65
    %v85 = vmul.f32 %v78, %v84
    %v86 = vsel %vm61, %v85, 0.0
    %87 = vadd.xlane.f32.xlu0 %v86
    %v88 = vpop.xlane.xlu0 %87
    %v89 = vrcp.pop %v81
    %v90 = vmul.f32 %v88, %v89
    %v91 = vsub.f32 %v72, %v83
    %v92 = vadd.f32 %v90, %v91
    %s93 = sadd.s32 0, 0
    %s94 = smul.u32 %s93, 8
    %s95 = ssub.s32 6, %s94
    %v96 = vlaneseq
    %v97 = vshrl.u32 %v96, 7
    %v98 = vstv %s95
    %vm99 = vcmp.lt.s32.totalorder %v97, %v98
    %v100 = vsel %vm99, %v92, 0.0
    %v101 = vld [vmem:[#allocation2] sm:$0xff]
    %v102 = vadd.f32 %v101, %v100
    %vm103 = vcmask 7168
    %104 = vst.msk [vmem:[#allocation2] sm:$0xff] %vm103, %v102
    // Predicated region
    $region22: #{tpu_custom_call.1} parent=1 // pred_check
      %p105 = pneg %p52
    $region23: #{tpu_custom_call.1} parent=1 // pred_check_branch
      %107 = sbr.rel (%p105) target = $region25
    $region24: #{tpu_custom_call.1} parent=1 // pred_region
      %v108 = vld [vmem:[#allocation2] sm:$0xff]
      %v109 = vsel %vm103, %v108, 0.0
      %110 = vadd.xlane.f32.xlu0 %v109
      %v111 = vpop.xlane.xlu0 %110
      %v112 = vrot.slane %v111, 4
      %v113 = vadd.f32 %v111, %v112
      %v114 = vrot.slane %v113, 2
      %v115 = vadd.f32 %v113, %v114
      %v116 = vrot.slane %v115, 1
      %v117 = vadd.f32 %v115, %v116
      %s118 = vtos %v117
      %v119 = vrcp.pop 16.0
      %s120 = vtos %v119
      %s121 = smul.f32 %s118, %s120
      %v122 = vstv %s121
      %123 = vst [vmem:[#allocation8] sm:$0xff] %v122
    $region25: #{tpu_custom_call.1} parent=1 // pred_fallthru
      _
    // Predicated region
    $region26: #{tpu_custom_call.1} parent=1 // pred_check
      _
    $region27: #{tpu_custom_call.1} parent=1 // pred_check_branch
      %125 = sbr.rel (0) target = $region29
    $region28: #{tpu_custom_call.1} parent=1 // pred_region
      %s127 = ssub.s32 128, 128
      %128 = vsyncadd [#allocation5], %s127
      %s130 = sshll.u32 [#allocation8], 4
      %s131 = int_to_ptr.vmem [resolvable:$true] %s130
      %133 = dma.vmem_to_hbm [thread:$0]  %s131, 128, %s2, [#allocation5]
    $region29: #{tpu_custom_call.1} parent=1 // pred_fallthru
      _
    // Predicated region
    $region30: #{tpu_custom_call.1} parent=1 // pred_check
      _
    $region31: #{tpu_custom_call.1} parent=1 // pred_check_branch
      %135 = sbr.rel (0) target = $region33
    $region32: #{tpu_custom_call.1} parent=1 // pred_region
      %136 = dma.done [#allocation5], 128
    $region33: #{tpu_custom_call.1} parent=1 // pred_fallthru
      _
    %137 = vsyncpa [#allocation4], 1
    %138 = vsyncpa [#allocation7], 1
    %139 = vsyncpa [#allocation5], 1

</llo_original>
